<compile_context>
chip_gen: v7x
topology: tpu7x:2x2x1
jax: 0.10.0
libtpu: 0.0.40
codegen_flags: <defaults>
</compile_context>

<pallas_src>
import functools

import numpy as np
import jax
import jax.numpy as jnp
from jax.experimental import pallas as pl
from jax.experimental.pallas import tpu as pltpu


# ----------------------------------------------------------------------------
# Glue: linear operators for adaptive pooling / bilinear upsample.
# ----------------------------------------------------------------------------
def _adaptive_pool_matrix(in_size, out_size):
    """PyTorch AdaptiveAvgPool1d operator as a (out_size, in_size) matrix."""
    m = np.zeros((out_size, in_size), dtype=np.float32)
    for i in range(out_size):
        start = (i * in_size) // out_size
        end = -(-((i + 1) * in_size) // out_size)  # ceil
        m[i, start:end] = 1.0 / float(end - start)
    return m


def _bilinear_matrix(out_size, in_size):
    """Bilinear (align_corners=True) upsample operator, (out_size, in_size)."""
    u = np.zeros((out_size, in_size), dtype=np.float32)
    if in_size == 1:
        u[:, 0] = 1.0
        return u
    for y in range(out_size):
        src = 0.0 if out_size == 1 else y * (in_size - 1) / (out_size - 1)
        y0 = int(np.floor(src))
        y1 = min(y0 + 1, in_size - 1)
        f = src - y0
        u[y, y0] += 1.0 - f
        u[y, y1] += f
    return u


def init_params(key, in_channels, pool_sizes, h, w, eps=1e-5):
    """Deterministic synthetic parameters (conv weights, folded BN)."""
    nb = len(pool_sizes)
    assert in_channels % nb == 0, (
        "in_channels must be divisible by len(pool_sizes)")
    co = in_channels // nb
    oc = nb * co
    hw = h * w
    s2_tot = sum(s * s for s in pool_sizes)
    # Shared lane-aligned pooled width; the (s2p - s2_tot) padded columns are
    # dead work in the pool/upsample matmuls (accepted; shrinks at larger
    # pool_sizes and the mask keeps them numerically inert).
    s2p = max(128, int(np.ceil(s2_tot / 128.0)) * 128)

    # Branch-concatenated pool / upsample operators + per-row branch mask.
    mpool = np.zeros((hw, s2p), np.float32)          # z @ mpool  -> pooled
    mup = np.zeros((s2p, hw), np.float32)            # pooled @ mup -> upsampled
    mask = np.zeros((oc, s2p), np.float32)           # valid (row, col) blocks
    wcat = np.zeros((oc, in_channels), np.float32)   # BN scale folded in
    shift = np.zeros((oc, 1), np.float32)            # BN shift

    ref_params = []
    keys = jax.random.split(key, 4 * nb)
    off = 0
    for b, s in enumerate(pool_sizes):
        ph = _adaptive_pool_matrix(h, s)  # (s, H)
        pw = _adaptive_pool_matrix(w, s)  # (s, W)
        uh = _bilinear_matrix(h, s)       # (H, s)
        uw = _bilinear_matrix(w, s)       # (W, s)
        mpool[:, off:off + s * s] = np.kron(ph, pw).T   # (H*W, s*s)
        mup[off:off + s * s, :] = np.kron(uh, uw).T     # (s*s, H*W)
        mask[b * co:(b + 1) * co, off:off + s * s] = 1.0

        k_w, k_g, k_b, k_m = keys[4 * b: 4 * b + 4]
        wmat = np.asarray(
            jax.random.normal(k_w, (co, in_channels), jnp.float32)
        ) / np.sqrt(in_channels)
        gamma = np.asarray(jax.random.uniform(k_g, (co,), jnp.float32, 0.5, 1.5))
        beta = 0.1 * np.asarray(jax.random.normal(k_b, (co,), jnp.float32))
        rmean = 0.1 * np.asarray(jax.random.normal(k_m, (co,), jnp.float32))
        rvar = np.linspace(0.5, 1.5, co, dtype=np.float32)
        sc = gamma / np.sqrt(rvar + eps)
        sh = beta - rmean * sc

        wcat[b * co:(b + 1) * co, :] = sc[:, None] * wmat   # fold BN scale into W
        shift[b * co:(b + 1) * co, 0] = sh
        off += s * s

        ref_params.append(
            (jnp.asarray(ph), jnp.asarray(pw), jnp.asarray(uh), jnp.asarray(uw),
             jnp.asarray(wmat), jnp.asarray(sc), jnp.asarray(sh)))

    kernel_params = (jnp.asarray(wcat), jnp.asarray(shift), jnp.asarray(mask),
                     jnp.asarray(mpool), jnp.asarray(mup))
    return kernel_params, ref_params


# ----------------------------------------------------------------------------
# Pallas kernel: NB images per grid step, all pyramid branches fused, concat
# with the passthrough channels done in-kernel.
# ----------------------------------------------------------------------------
def _ppm_kernel(x_ref, w_ref, shift_ref, mask_ref, mpool_ref, mup_ref, out_ref,
                *, c, nb_img):
    hw = x_ref.shape[-1]
    oc = w_ref.shape[0]
    # Matmul-operand dtype (f32 here; set bf16 via the wrapper on v6e/v7x).
    cdt = mpool_ref.dtype

    # Fused passthrough concat: x is already resident in VMEM, so the first C
    # output channels are written directly (no wrapper-side jnp.concatenate,
    # no second HBM round-trip for x).
    out_ref[:, :c, :] = x_ref[...].astype(out_ref.dtype)

    # Fused adaptive average pooling for every branch at once; the NB images
    # are stacked along the MXU M dim and share ONE pooling matrix.
    x2d = x_ref[...].astype(cdt).reshape(nb_img * c, hw)
    pooled = jnp.dot(x2d, mpool_ref[...],
                     preferred_element_type=jnp.float32)          # (NB*C, S2P)

    # Per-image 1x1 conv (eval-mode BN scale folded into w) + BN shift + ReLU
    # + branch mask.  Pooling first shrinks the conv's N dim from HW to S2P,
    # and the tiny per-image matmul replaces the old block-diagonal kron
    # weight (no nb_img x wasted contraction, no quadratic VMEM).
    w = w_ref[...]
    shift = shift_ref[...]
    mask = mask_ref[...]
    ys = []
    for b in range(nb_img):                 # static unroll; nb_img is small
        pb = pooled[b * c:(b + 1) * c, :].astype(cdt)             # (C, S2P)
        zb = jnp.dot(w, pb, preferred_element_type=jnp.float32)   # (OC, S2P)
        # mask zeroes off-branch / padded columns so the shared upsample
        # matmul cannot cross-contaminate branches.
        ys.append(jnp.maximum(zb + shift, 0.0) * mask)
    y = jnp.concatenate(ys, axis=0)                               # (NB*OC, S2P)

    # Fused bilinear upsample (align_corners=True), all branches/images at
    # once with ONE shared upsample matrix.
    up = jnp.dot(y.astype(cdt), mup_ref[...],
                 preferred_element_type=jnp.float32)              # (NB*OC, HW)
    out_ref[:, c:, :] = up.reshape(nb_img, oc, hw).astype(out_ref.dtype)


def pyramid_pooling_module(x, kernel_params, pool_sizes, images_per_block=None,
                           matmul_dtype=None):
    n, c, h, w_sp = x.shape
    nb = len(pool_sizes)
    assert c % nb == 0, "in_channels must be divisible by len(pool_sizes)"
    co = c // nb
    oc = nb * co
    hw = h * w_sp
    wcat, shift, mask, mpool, mup = kernel_params
    s2p = mpool.shape[-1]

    if matmul_dtype is not None:
        # bf16 operands (f32 accumulate) roughly double the MXU rate on
        # v6e/v7x and halve the x/param bytes; default stays f32 so the
        # 1e-4 correctness check below holds.
        wcat = wcat.astype(matmul_dtype)
        mpool = mpool.astype(matmul_dtype)
        mup = mup.astype(matmul_dtype)

    if images_per_block is None:
        # Target ~256 stacked MXU rows (v6e/v7x MXU M; v5e's 128 is a strict
        # subset).  Only split the grid into >=2 steps (useful for v7x's two
        # TensorCores) when that does not drop the M-fill below 128 rows.
        rows = max(c, oc)
        images_per_block = max(1, min(n, 256 // max(rows, 1)))
        if (n // images_per_block < 2 and n >= 2
                and (n // 2) * rows >= 128):
            images_per_block = max(1, n // 2)
        while n % images_per_block:
            images_per_block -= 1
    nb_img = images_per_block
    assert n % nb_img == 0

    x_flat = x.reshape(n, c, hw)

    # Cost estimate for the kron-free op set: pool + per-image conv + upsample.
    flops = int(2 * n * (c * hw * s2p + oc * c * s2p + oc * s2p * hw))
    param_bytes = sum(int(p.size) * p.dtype.itemsize
                      for p in (wcat, shift, mask, mpool, mup))
    bytes_accessed = int(x.dtype.itemsize * (n * c * hw + n * (c + oc) * hw)
                         + param_bytes)

    # VMEM budget: double-buffered x/out blocks + params + slack for the
    # in-kernel intermediates.  Clamped to the 32 MiB scoped default at small
    # sizes and ~96 MiB at large sizes (v5e/v6e: 128 MiB physical; on v7x
    # (64 MiB) pick nb_img so this stays comfortably below ~56 MiB).
    block_bytes = x.dtype.itemsize * nb_img * (2 * c + oc) * hw
    vmem_limit = int(min(96 * 1024 * 1024,
                         max(32 * 1024 * 1024,
                             4 * block_bytes + 2 * param_bytes + (4 << 20))))

    kernel = functools.partial(_ppm_kernel, c=c, nb_img=nb_img)

    out_flat = pl.pallas_call(
        kernel,
        out_shape=jax.ShapeDtypeStruct((n, c + oc, hw), x.dtype),
        grid_spec=pltpu.PrefetchScalarGridSpec(
            num_scalar_prefetch=0,
            grid=(n // nb_img,),
            in_specs=[
                pl.BlockSpec((nb_img, c, hw), lambda i: (i, 0, 0)),
                pl.BlockSpec((oc, c), lambda i: (0, 0)),
                pl.BlockSpec((oc, 1), lambda i: (0, 0)),
                pl.BlockSpec((oc, s2p), lambda i: (0, 0)),
                pl.BlockSpec((hw, s2p), lambda i: (0, 0)),
                pl.BlockSpec((s2p, hw), lambda i: (0, 0)),
            ],
            out_specs=pl.BlockSpec((nb_img, c + oc, hw), lambda i: (i, 0, 0)),
        ),
        compiler_params=pltpu.CompilerParams(
            dimension_semantics=("parallel",),
            vmem_limit_bytes=vmem_limit),
        cost_estimate=pl.CostEstimate(
            flops=flops, transcendentals=0, bytes_accessed=bytes_accessed),
    )(x_flat, wcat, shift, mask, mpool, mup)

    return out_flat.reshape(n, c + oc, h, w_sp)


# ----------------------------------------------------------------------------
# Pure-JAX reference (original op order, unfused) for a correctness check.
# ----------------------------------------------------------------------------
def reference(x, ref_params):
    outs = [x]
    for (ph, pw, uh, uw, wmat, sc, sh) in ref_params:
        pooled = jnp.einsum('nchw,ih,jw->ncij', x, ph, pw)
        y = jnp.einsum('oc,ncij->noij', wmat, pooled)
        y = jnp.maximum(y * sc[None, :, None, None] + sh[None, :, None, None],
                        0.0)
        up = jnp.einsum('noij,yi,xj->noyx', y, uh, uw)
        outs.append(up)
    return jnp.concatenate(outs, axis=1)


if __name__ == "__main__":
    key = jax.random.PRNGKey(0)
    k_x, k_p = jax.random.split(key)

    N, C, H, W = 4, 8, 16, 16
    pool_sizes = (1, 2, 3, 6)

    x = jax.random.normal(k_x, (N, C, H, W), jnp.float32)
    kernel_params, ref_params = init_params(k_p, C, pool_sizes, H, W)

    out = pyramid_pooling_module(x, kernel_params, pool_sizes)
    out = jax.block_until_ready(out)

    nb = len(pool_sizes)
    assert out.shape == (N, C + nb * (C // nb), H, W), out.shape

    ref = reference(x, ref_params)
    if not jnp.allclose(out, ref, atol=1e-4, rtol=1e-4):
        raise AssertionError(
            f"kernel/reference mismatch, max abs err = "
            f"{float(jnp.max(jnp.abs(out - ref)))}")

    print("KERNEL_OK")
</pallas_src>

<mosaic_0001>
module attributes {stable_mosaic.version = 11 : i64} {
  func.func @_ppm_kernel(%arg0: i32, %arg1: memref<4x8x256xf32, #tpu.memory_space<vmem>>, %arg2: memref<8x8xf32, #tpu.memory_space<vmem>>, %arg3: memref<8x1xf32, #tpu.memory_space<vmem>>, %arg4: memref<8x128xf32, #tpu.memory_space<vmem>>, %arg5: memref<256x128xf32, #tpu.memory_space<vmem>>, %arg6: memref<128x256xf32, #tpu.memory_space<vmem>>, %arg7: memref<4x16x256xf32, #tpu.memory_space<vmem>>) attributes {dimension_semantics = [#tpu.dimension_semantics<parallel>], iteration_bounds = array<i64: 1>, scalar_prefetch = 0 : i64, scratch_operands = 0 : i64, tpu.core_type = #tpu.core_type<tc>, window_params = [{transform_indices = @transform_0, window_bounds = array<i64: 4, 8, 256>}, {pipeline_mode = #tpu.pipeline_mode<synchronous>, transform_indices = @transform_1, window_bounds = array<i64: 8, 8>}, {pipeline_mode = #tpu.pipeline_mode<synchronous>, transform_indices = @transform_2, window_bounds = array<i64: 8, 1>}, {pipeline_mode = #tpu.pipeline_mode<synchronous>, transform_indices = @transform_3, window_bounds = array<i64: 8, 128>}, {pipeline_mode = #tpu.pipeline_mode<synchronous>, transform_indices = @transform_4, window_bounds = array<i64: 256, 128>}, {pipeline_mode = #tpu.pipeline_mode<synchronous>, transform_indices = @transform_5, window_bounds = array<i64: 128, 256>}, {transform_indices = @transform_6, window_bounds = array<i64: 4, 16, 256>}]} {
    %c0 = arith.constant 0 : index
    %c0_0 = arith.constant 0 : index
    %c0_1 = arith.constant 0 : index
    %0 = vector.load %arg1[%c0, %c0_0, %c0_1] : memref<4x8x256xf32, #tpu.memory_space<vmem>>, vector<4x8x256xf32>
    %c0_2 = arith.constant 0 : index
    %c0_3 = arith.constant 0 : index
    %c0_4 = arith.constant 0 : index
    %1 = vector.load %arg7[%c0_2, %c0_3, %c0_4] : memref<4x16x256xf32, #tpu.memory_space<vmem>>, vector<4x8x256xf32>
    tpu.vector_store %arg7[%c0_2, %c0_3, %c0_4], %0 {strides = array<i32>} : memref<4x16x256xf32, #tpu.memory_space<vmem>>, vector<4x8x256xf32>,
    %c0_5 = arith.constant 0 : index
    %c0_6 = arith.constant 0 : index
    %c0_7 = arith.constant 0 : index
    %2 = vector.load %arg1[%c0_5, %c0_6, %c0_7] : memref<4x8x256xf32, #tpu.memory_space<vmem>>, vector<4x8x256xf32>
    %3 = vector.shape_cast %2 : vector<4x8x256xf32> to vector<32x256xf32>
    %c0_8 = arith.constant 0 : index
    %c0_9 = arith.constant 0 : index
    %4 = vector.load %arg5[%c0_8, %c0_9] : memref<256x128xf32, #tpu.memory_space<vmem>>, vector<256x128xf32>
    %cst = arith.constant dense<0.000000e+00> : vector<32x128xf32>
    %5 = tpu.matmul %3, %4, %cst {dimension_numbers = #tpu.dot_dimension_numbers<[1], [0], [0], [1], [0, 0, 1, 1], [], []>} : vector<32x256xf32>, vector<256x128xf32>, vector<32x128xf32> -> vector<32x128xf32>
    %c0_10 = arith.constant 0 : index
    %c0_11 = arith.constant 0 : index
    %6 = vector.load %arg2[%c0_10, %c0_11] : memref<8x8xf32, #tpu.memory_space<vmem>>, vector<8x8xf32>
    %c0_12 = arith.constant 0 : index
    %c0_13 = arith.constant 0 : index
    %7 = vector.load %arg3[%c0_12, %c0_13] : memref<8x1xf32, #tpu.memory_space<vmem>>, vector<8x1xf32>
    %c0_14 = arith.constant 0 : index
    %c0_15 = arith.constant 0 : index
    %8 = vector.load %arg4[%c0_14, %c0_15] : memref<8x128xf32, #tpu.memory_space<vmem>>, vector<8x128xf32>
    %9 = vector.extract_strided_slice %5 {offsets = [0, 0], sizes = [8, 128], strides = [1, 1]} : vector<32x128xf32> to vector<8x128xf32>
    %cst_16 = arith.constant dense<0.000000e+00> : vector<8x128xf32>
    %10 = tpu.matmul %6, %9, %cst_16 {dimension_numbers = #tpu.dot_dimension_numbers<[1], [0], [0], [1], [0, 0, 1, 1], [], []>} : vector<8x8xf32>, vector<8x128xf32>, vector<8x128xf32> -> vector<8x128xf32>
    %11 = vector.broadcast %7 : vector<8x1xf32> to vector<8x128xf32>
    %12 = arith.addf %10, %11 : vector<8x128xf32>
    %cst_17 = arith.constant 0.000000e+00 : f32
    %13 = vector.broadcast %cst_17 : f32 to vector<8x128xf32>
    %14 = arith.maximumf %12, %13 : vector<8x128xf32>
    %15 = arith.mulf %14, %8 : vector<8x128xf32>
    %16 = vector.extract_strided_slice %5 {offsets = [8, 0], sizes = [8, 128], strides = [1, 1]} : vector<32x128xf32> to vector<8x128xf32>
    %cst_18 = arith.constant dense<0.000000e+00> : vector<8x128xf32>
    %17 = tpu.matmul %6, %16, %cst_18 {dimension_numbers = #tpu.dot_dimension_numbers<[1], [0], [0], [1], [0, 0, 1, 1], [], []>} : vector<8x8xf32>, vector<8x128xf32>, vector<8x128xf32> -> vector<8x128xf32>
    %18 = vector.broadcast %7 : vector<8x1xf32> to vector<8x128xf32>
    %19 = arith.addf %17, %18 : vector<8x128xf32>
    %cst_19 = arith.constant 0.000000e+00 : f32
    %20 = vector.broadcast %cst_19 : f32 to vector<8x128xf32>
    %21 = arith.maximumf %19, %20 : vector<8x128xf32>
    %22 = arith.mulf %21, %8 : vector<8x128xf32>
    %23 = vector.extract_strided_slice %5 {offsets = [16, 0], sizes = [8, 128], strides = [1, 1]} : vector<32x128xf32> to vector<8x128xf32>
    %cst_20 = arith.constant dense<0.000000e+00> : vector<8x128xf32>
    %24 = tpu.matmul %6, %23, %cst_20 {dimension_numbers = #tpu.dot_dimension_numbers<[1], [0], [0], [1], [0, 0, 1, 1], [], []>} : vector<8x8xf32>, vector<8x128xf32>, vector<8x128xf32> -> vector<8x128xf32>
    %25 = vector.broadcast %7 : vector<8x1xf32> to vector<8x128xf32>
    %26 = arith.addf %24, %25 : vector<8x128xf32>
    %cst_21 = arith.constant 0.000000e+00 : f32
    %27 = vector.broadcast %cst_21 : f32 to vector<8x128xf32>
    %28 = arith.maximumf %26, %27 : vector<8x128xf32>
    %29 = arith.mulf %28, %8 : vector<8x128xf32>
    %30 = vector.extract_strided_slice %5 {offsets = [24, 0], sizes = [8, 128], strides = [1, 1]} : vector<32x128xf32> to vector<8x128xf32>
    %cst_22 = arith.constant dense<0.000000e+00> : vector<8x128xf32>
    %31 = tpu.matmul %6, %30, %cst_22 {dimension_numbers = #tpu.dot_dimension_numbers<[1], [0], [0], [1], [0, 0, 1, 1], [], []>} : vector<8x8xf32>, vector<8x128xf32>, vector<8x128xf32> -> vector<8x128xf32>
    %32 = vector.broadcast %7 : vector<8x1xf32> to vector<8x128xf32>
    %33 = arith.addf %31, %32 : vector<8x128xf32>
    %cst_23 = arith.constant 0.000000e+00 : f32
    %34 = vector.broadcast %cst_23 : f32 to vector<8x128xf32>
    %35 = arith.maximumf %33, %34 : vector<8x128xf32>
    %36 = arith.mulf %35, %8 : vector<8x128xf32>
    %37 = tpu.concatenate %15, %22, %29, %36 in 0 : vector<8x128xf32>, vector<8x128xf32>, vector<8x128xf32>, vector<8x128xf32> -> vector<32x128xf32>
    %c0_24 = arith.constant 0 : index
    %c0_25 = arith.constant 0 : index
    %38 = vector.load %arg6[%c0_24, %c0_25] : memref<128x256xf32, #tpu.memory_space<vmem>>, vector<128x256xf32>
    %cst_26 = arith.constant dense<0.000000e+00> : vector<32x256xf32>
    %39 = tpu.matmul %37, %38, %cst_26 {dimension_numbers = #tpu.dot_dimension_numbers<[1], [0], [0], [1], [0, 0, 1, 1], [], []>} : vector<32x128xf32>, vector<128x256xf32>, vector<32x256xf32> -> vector<32x256xf32>
    %40 = vector.shape_cast %39 : vector<32x256xf32> to vector<4x8x256xf32>
    %c0_27 = arith.constant 0 : index
    %c8 = arith.constant 8 : index
    %c0_28 = arith.constant 0 : index
    %41 = vector.load %arg7[%c0_27, %c8, %c0_28] : memref<4x16x256xf32, #tpu.memory_space<vmem>>, vector<4x8x256xf32>
    tpu.vector_store %arg7[%c0_27, %c8, %c0_28], %40 {strides = array<i32>} : memref<4x16x256xf32, #tpu.memory_space<vmem>>, vector<4x8x256xf32>,
    return
  }
  func.func @transform_0(%arg0: i32) -> (i32, i32, i32) {
    %c0_i32 = arith.constant 0 : i32
    %c0_i32_0 = arith.constant 0 : i32
    %c0_i32_1 = arith.constant 0 : i32
    return %arg0, %c0_i32, %c0_i32_0 : i32, i32, i32
  }
  func.func @transform_1(%arg0: i32) -> (i32, i32) {
    %c0_i32 = arith.constant 0 : i32
    %c0_i32_0 = arith.constant 0 : i32
    %c0_i32_1 = arith.constant 0 : i32
    return %c0_i32, %c0_i32_0 : i32, i32
  }
  func.func @transform_2(%arg0: i32) -> (i32, i32) {
    %c0_i32 = arith.constant 0 : i32
    %c0_i32_0 = arith.constant 0 : i32
    %c0_i32_1 = arith.constant 0 : i32
    return %c0_i32, %c0_i32_0 : i32, i32
  }
  func.func @transform_3(%arg0: i32) -> (i32, i32) {
    %c0_i32 = arith.constant 0 : i32
    %c0_i32_0 = arith.constant 0 : i32
    %c0_i32_1 = arith.constant 0 : i32
    return %c0_i32, %c0_i32_0 : i32, i32
  }
  func.func @transform_4(%arg0: i32) -> (i32, i32) {
    %c0_i32 = arith.constant 0 : i32
    %c0_i32_0 = arith.constant 0 : i32
    %c0_i32_1 = arith.constant 0 : i32
    return %c0_i32, %c0_i32_0 : i32, i32
  }
  func.func @transform_5(%arg0: i32) -> (i32, i32) {
    %c0_i32 = arith.constant 0 : i32
    %c0_i32_0 = arith.constant 0 : i32
    %c0_i32_1 = arith.constant 0 : i32
    return %c0_i32, %c0_i32_0 : i32, i32
  }
  func.func @transform_6(%arg0: i32) -> (i32, i32, i32) {
    %c0_i32 = arith.constant 0 : i32
    %c0_i32_0 = arith.constant 0 : i32
    %c0_i32_1 = arith.constant 0 : i32
    return %arg0, %c0_i32, %c0_i32_0 : i32, i32, i32
  }
}

</mosaic_0001>

<llo_original>
// kernel: tpu_custom_call.1
$region0: #{tpu_custom_call.1}
  #allocation0 [shape = 'u32[]', space=smem, size = 0x4, offset = 0x4, fixed_abs, tag = 'smem constant byte address 0x4 - core index']
  #allocation1 [shape = 'u32[144,128]{1,0:T(1,128)}', space=vmem, size = 0x12000, scoped, tag = 'internal scratch']
  %s0 = inlined_call_operand.hbm [shape: f32[4,8,256], index: 0, kind: input, shape index: {}]
  %s1 = inlined_call_operand.vmem [shape: f32[8,8], index: 1, kind: input, shape index: {}]
  %s2 = inlined_call_operand.vmem [shape: f32[8,1], index: 2, kind: input, shape index: {}]
  %s3 = inlined_call_operand.vmem [shape: f32[8,128], index: 3, kind: input, shape index: {}]
  %s4 = inlined_call_operand.hbm [shape: f32[256,128], index: 4, kind: input, shape index: {}]
  %s5 = inlined_call_operand.hbm [shape: f32[128,256], index: 5, kind: input, shape index: {}]
  %s6 = inlined_call_operand.hbm [shape: f32[4,16,256], index: 6, kind: output, shape index: {}]
  %s7 = sld [smem:[#allocation0]]
  $region46: #{tpu_custom_call.1} parent=0
    _
  %s9 = ssub.s32 1, %s7
  %s10 = scalar_select 0, %s9, %s7
  $region1: #{tpu_custom_call.1} parent=0
    #allocation2 [shape = 'u8[32768]{0}', space=vmem, size = 0x8000, scoped, tag = 'input window, operand 0, single buffered']
    #allocation3 [shape = 's32[1]{0}', space=sflag, size = 0x4, scoped, tag = 'scoped memory for tpu_custom_call.1']
    #allocation4 [shape = 's32[1]{0}', space=sflag, size = 0x4, scoped, tag = 'scoped memory for tpu_custom_call.1']
    #allocation5 [shape = 'u8[131072]{0}', space=vmem, size = 0x20000, scoped, tag = 'input window, operand 4, single buffered']
    #allocation6 [shape = 's32[1]{0}', space=sflag, size = 0x4, scoped, tag = 'scoped memory for tpu_custom_call.1']
    #allocation7 [shape = 'u8[131072]{0}', space=vmem, size = 0x20000, scoped, tag = 'input window, operand 5, single buffered']
    #allocation8 [shape = 'u8[65536]{0}', space=vmem, size = 0x10000, scoped, tag = 'output window, operand 0, single buffered']
    %11 = vsyncpa [#allocation3], 0
    %12 = vsyncpa [#allocation6], 0
    %13 = vsyncpa [#allocation4], 0
    // Predicated region
    $region2: #{tpu_custom_call.1} parent=1 // pred_check
      _
    $region3: #{tpu_custom_call.1} parent=1 // pred_check_branch
      %15 = sbr.rel (0) target = $region5
    $region4: #{tpu_custom_call.1} parent=1 // pred_region
      %s17 = ssub.s32 1024, 1024
      %18 = vsyncadd [#allocation3], %s17
      %s19 = sshll.u32 [#allocation2], 4
      %s20 = int_to_ptr.vmem [resolvable:$true] %s19
      %25 = dma.hbm_to_vmem [thread:$0]  %s0, 1024, %s20, [#allocation3], 256, 256, 16
    $region5: #{tpu_custom_call.1} parent=1 // pred_fallthru
      _
    // Predicated region
    $region6: #{tpu_custom_call.1} parent=1 // pred_check
      _
    $region7: #{tpu_custom_call.1} parent=1 // pred_check_branch
      %27 = sbr.rel (0) target = $region9
    $region8: #{tpu_custom_call.1} parent=1 // pred_region
      _
    $region9: #{tpu_custom_call.1} parent=1 // pred_fallthru
      _
    // Predicated region
    $region10: #{tpu_custom_call.1} parent=1 // pred_check
      _
    $region11: #{tpu_custom_call.1} parent=1 // pred_check_branch
      %29 = sbr.rel (0) target = $region13
    $region12: #{tpu_custom_call.1} parent=1 // pred_region
      _
    $region13: #{tpu_custom_call.1} parent=1 // pred_fallthru
      _
    // Predicated region
    $region14: #{tpu_custom_call.1} parent=1 // pred_check
      _
    $region15: #{tpu_custom_call.1} parent=1 // pred_check_branch
      %31 = sbr.rel (0) target = $region17
    $region16: #{tpu_custom_call.1} parent=1 // pred_region
      _
    $region17: #{tpu_custom_call.1} parent=1 // pred_fallthru
      _
    // Predicated region
    $region18: #{tpu_custom_call.1} parent=1 // pred_check
      _
    $region19: #{tpu_custom_call.1} parent=1 // pred_check_branch
      %33 = sbr.rel (0) target = $region21
    $region20: #{tpu_custom_call.1} parent=1 // pred_region
      %s35 = ssub.s32 4096, 4096
      %36 = vsyncadd [#allocation6], %s35
      %s37 = sshll.u32 [#allocation5], 4
      %s38 = int_to_ptr.vmem [resolvable:$true] %s37
      %43 = dma.hbm_to_vmem [thread:$0]  %s4, 4096, %s38, [#allocation6], 128, 128, 8
    $region21: #{tpu_custom_call.1} parent=1 // pred_fallthru
      _
    // Predicated region
    $region22: #{tpu_custom_call.1} parent=1 // pred_check
      _
    $region23: #{tpu_custom_call.1} parent=1 // pred_check_branch
      %45 = sbr.rel (0) target = $region25
    $region24: #{tpu_custom_call.1} parent=1 // pred_region
      %s47 = ssub.s32 4096, 4096
      %48 = vsyncadd [#allocation6], %s47
      %s49 = sshll.u32 [#allocation7], 4
      %s50 = int_to_ptr.vmem [resolvable:$true] %s49
      %55 = dma.hbm_to_vmem [thread:$0]  %s5, 4096, %s50, [#allocation6], 256, 256, 16
    $region25: #{tpu_custom_call.1} parent=1 // pred_fallthru
      _
    // Predicated region
    $region26: #{tpu_custom_call.1} parent=1 // pred_check
      _
    $region27: #{tpu_custom_call.1} parent=1 // pred_check_branch
      %57 = sbr.rel (0) target = $region29
    $region28: #{tpu_custom_call.1} parent=1 // pred_region
      %58 = dma.done [#allocation3], 1024
    $region29: #{tpu_custom_call.1} parent=1 // pred_fallthru
      _
    // Predicated region
    $region30: #{tpu_custom_call.1} parent=1 // pred_check
      _
    $region31: #{tpu_custom_call.1} parent=1 // pred_check_branch
      %60 = sbr.rel (0) target = $region33
    $region32: #{tpu_custom_call.1} parent=1 // pred_region
      %61 = dma.done [#allocation6], 4096
    $region33: #{tpu_custom_call.1} parent=1 // pred_fallthru
      _
    // Predicated region
    $region34: #{tpu_custom_call.1} parent=1 // pred_check
      _
    $region35: #{tpu_custom_call.1} parent=1 // pred_check_branch
      %63 = sbr.rel (0) target = $region37
    $region36: #{tpu_custom_call.1} parent=1 // pred_region
      %64 = dma.done [#allocation6], 4096
    $region37: #{tpu_custom_call.1} parent=1 // pred_fallthru
      _
    %v65 = vld [vmem:[#allocation2] sm:$0xff]
    %v66 = vld [vmem:[#allocation2 + $0x8] sm:$0xff]
    %v67 = vld [vmem:[#allocation2 + $0x10] sm:$0xff]
    %v68 = vld [vmem:[#allocation2 + $0x18] sm:$0xff]
    %v69 = vld [vmem:[#allocation2 + $0x20] sm:$0xff]
    %v70 = vld [vmem:[#allocation2 + $0x28] sm:$0xff]
    %v71 = vld [vmem:[#allocation2 + $0x30] sm:$0xff]
    %v72 = vld [vmem:[#allocation2 + $0x38] sm:$0xff]
    %73 = vst [vmem:[#allocation8] sm:$0xff] %v65
    %74 = vst [vmem:[#allocation8 + $0x8] sm:$0xff] %v66
    %75 = vst [vmem:[#allocation8 + $0x20] sm:$0xff] %v67
    %76 = vst [vmem:[#allocation8 + $0x28] sm:$0xff] %v68
    %77 = vst [vmem:[#allocation8 + $0x40] sm:$0xff] %v69
    %78 = vst [vmem:[#allocation8 + $0x48] sm:$0xff] %v70
    %79 = vst [vmem:[#allocation8 + $0x60] sm:$0xff] %v71
    %80 = vst [vmem:[#allocation8 + $0x68] sm:$0xff] %v72
    %v81 = vld [vmem:[#allocation2] sm:$0xff]
    %v82 = vld [vmem:[#allocation2 + $0x8] sm:$0xff]
    %v83 = vld [vmem:[#allocation2 + $0x10] sm:$0xff]
    %v84 = vld [vmem:[#allocation2 + $0x18] sm:$0xff]
    %v85 = vld [vmem:[#allocation2 + $0x20] sm:$0xff]
    %v86 = vld [vmem:[#allocation2 + $0x28] sm:$0xff]
    %v87 = vld [vmem:[#allocation2 + $0x30] sm:$0xff]
    %v88 = vld [vmem:[#allocation2 + $0x38] sm:$0xff]
    %v89 = vld [vmem:[#allocation5] sm:$0xff]
    %v90 = vld [vmem:[#allocation5 + $0x8] sm:$0xff]
    %v91 = vld [vmem:[#allocation5 + $0x10] sm:$0xff]
    %v92 = vld [vmem:[#allocation5 + $0x18] sm:$0xff]
    %v93 = vld [vmem:[#allocation5 + $0x20] sm:$0xff]
    %v94 = vld [vmem:[#allocation5 + $0x28] sm:$0xff]
    %v95 = vld [vmem:[#allocation5 + $0x30] sm:$0xff]
    %v96 = vld [vmem:[#allocation5 + $0x38] sm:$0xff]
    %v97 = vld [vmem:[#allocation5 + $0x40] sm:$0xff]
    %v98 = vld [vmem:[#allocation5 + $0x48] sm:$0xff]
    %v99 = vld [vmem:[#allocation5 + $0x50] sm:$0xff]
    %v100 = vld [vmem:[#allocation5 + $0x58] sm:$0xff]
    %v101 = vld [vmem:[#allocation5 + $0x60] sm:$0xff]
    %v102 = vld [vmem:[#allocation5 + $0x68] sm:$0xff]
    %v103 = vld [vmem:[#allocation5 + $0x70] sm:$0xff]
    %v104 = vld [vmem:[#allocation5 + $0x78] sm:$0xff]
    %v105 = vld [vmem:[#allocation5 + $0x80] sm:$0xff]
    %v106 = vld [vmem:[#allocation5 + $0x88] sm:$0xff]
    %v107 = vld [vmem:[#allocation5 + $0x90] sm:$0xff]
    %v108 = vld [vmem:[#allocation5 + $0x98] sm:$0xff]
    %v109 = vld [vmem:[#allocation5 + $0xa0] sm:$0xff]
    %v110 = vld [vmem:[#allocation5 + $0xa8] sm:$0xff]
    %v111 = vld [vmem:[#allocation5 + $0xb0] sm:$0xff]
    %v112 = vld [vmem:[#allocation5 + $0xb8] sm:$0xff]
    %v113 = vld [vmem:[#allocation5 + $0xc0] sm:$0xff]
    %v114 = vld [vmem:[#allocation5 + $0xc8] sm:$0xff]
    %v115 = vld [vmem:[#allocation5 + $0xd0] sm:$0xff]
    %v116 = vld [vmem:[#allocation5 + $0xd8] sm:$0xff]
    %v117 = vld [vmem:[#allocation5 + $0xe0] sm:$0xff]
    %v118 = vld [vmem:[#allocation5 + $0xe8] sm:$0xff]
    %v119 = vld [vmem:[#allocation5 + $0xf0] sm:$0xff]
    %v120 = vld [vmem:[#allocation5 + $0xf8] sm:$0xff]
    %121 = vmatprep.subr.mxu0 0.0
    %122 = vmatpush1.msra.mxu0 %v89
    %123 = vmatprep.subr.mxu0 0.0
    %124 = vmatpush1.msra.mxu0 %v90
    %125 = vmatprep.subr.mxu0 0.0
    %126 = vmatpush1.msra.mxu0 %v91
    %127 = vmatprep.subr.mxu0 0.0
    %128 = vmatpush1.msra.mxu0 %v92
    %129 = vmatprep.subr.mxu0 0.0
    %130 = vmatpush1.msra.mxu0 %v93
    %131 = vmatprep.subr.mxu0 0.0
    %132 = vmatpush1.msra.mxu0 %v94
    %133 = vmatprep.subr.mxu0 0.0
    %134 = vmatpush1.msra.mxu0 %v95
    %135 = vmatprep.subr.mxu0 0.0
    %136 = vmatpush1.msra.mxu0 %v96
    %137 = vmatprep.subr.mxu0 0.0
    %138 = vmatpush1.msra.mxu0 %v97
    %139 = vmatprep.subr.mxu0 0.0
    %140 = vmatpush1.msra.mxu0 %v98
    %141 = vmatprep.subr.mxu0 0.0
    %142 = vmatpush1.msra.mxu0 %v99
    %143 = vmatprep.subr.mxu0 0.0
    %144 = vmatpush1.msra.mxu0 %v100
    %145 = vmatprep.subr.mxu0 0.0
    %146 = vmatpush1.msra.mxu0 %v101
    %147 = vmatprep.subr.mxu0 0.0
    %148 = vmatpush1.msra.mxu0 %v102
    %149 = vmatprep.subr.mxu0 0.0
    %150 = vmatpush1.msra.mxu0 %v103
    %151 = vmatprep.subr.mxu0 0.0
    %152 = vmatpush1.msra.mxu0 %v104
    %153 = vmatprep.subr.mxu0 0.0
    %154 = vmatpush1.msra.mxu0 %v105
    %155 = vmatprep.subr.mxu0 0.0
    %156 = vmatpush1.msra.mxu0 %v106
    %157 = vmatprep.subr.mxu0 0.0
    %158 = vmatpush1.msra.mxu0 %v107
    %159 = vmatprep.subr.mxu0 0.0
    %160 = vmatpush1.msra.mxu0 %v108
    %161 = vmatprep.subr.mxu0 0.0
    %162 = vmatpush1.msra.mxu0 %v109
    %163 = vmatprep.subr.mxu0 0.0
    %164 = vmatpush1.msra.mxu0 %v110
    %165 = vmatprep.subr.mxu0 0.0
    %166 = vmatpush1.msra.mxu0 %v111
    %167 = vmatprep.subr.mxu0 0.0
    %168 = vmatpush1.msra.mxu0 %v112
    %169 = vmatprep.subr.mxu0 0.0
    %170 = vmatpush1.msra.mxu0 %v113
    %171 = vmatprep.subr.mxu0 0.0
    %172 = vmatpush1.msra.mxu0 %v114
    %173 = vmatprep.subr.mxu0 0.0
    %174 = vmatpush1.msra.mxu0 %v115
    %175 = vmatprep.subr.mxu0 0.0
    %176 = vmatpush1.msra.mxu0 %v116
    %177 = vmatprep.subr.mxu0 0.0
    %178 = vmatpush1.msra.mxu0 %v117
    %179 = vmatprep.subr.mxu0 0.0
    %180 = vmatpush1.msra.mxu0 %v118
    %181 = vmatprep.subr.mxu0 0.0
    %182 = vmatpush1.msra.mxu0 %v119
    %183 = vmatprep.subr.mxu0 0.0
    %184 = vmatpush1.msra.mxu0 %v120
    %185 = vmatprep.mubr.f32.mxu0 %v82
    %186 = vmatmul.mubr.f32.gmra.mrb[0].mxu0 %v81
    %v187 = vpop.f32.mrb[0].mxu0
    %v188 = vadd.f32 0.0, %v187
    %v189 = vpop.f32.mrb[0].mxu0
    %190 = vmatprep.mubr.f32.mxu0 %v84
    %191 = vmatmul.mubr.f32.gmra.mrb[0].mxu0 %v83
    %v192 = vpop.f32.mrb[0].mxu0
    %v193 = vadd.f32 0.0, %v192
    %v194 = vpop.f32.mrb[0].mxu0
    %195 = vmatprep.mubr.f32.mxu0 %v86
    %196 = vmatmul.mubr.f32.gmra.mrb[0].mxu0 %v85
    %v197 = vpop.f32.mrb[0].mxu0
    %v198 = vadd.f32 0.0, %v197
    %v199 = vpop.f32.mrb[0].mxu0
    %200 = vmatprep.mubr.f32.mxu0 %v88
    %201 = vmatmul.mubr.f32.gmra.mrb[0].mxu0 %v87
    %v202 = vpop.f32.mrb[0].mxu0
    %v203 = vadd.f32 0.0, %v202
    %v204 = vpop.f32.mrb[0].mxu0
    %205 = vdwg.mxu0
    %v206 = vld [vmem:[%s1] sm:$0xff]
    %v207 = vld [vmem:[%s2] sm:$0xff]
    %v208 = vld [vmem:[%s3] sm:$0xff]
    %210 = vset.pattern.permute.xlu0 0
    %211 = vperm.xlu0 %210, %v207
    %v212 = vpop.permute.xlu0 %211
    %vm214 = vcmask 64512
    %v216 = vsel %vm214, %v206, 0
    %218 = vmatprep.subr.mxu0 0.0
    %219 = vmatpush1.msra.mxu0 %v188
    %220 = vmatprep.subr.mxu0 0.0
    %221 = vmatpush1.msra.mxu0 0.0
    %222 = vmatprep.subr.mxu0 0.0
    %223 = vmatpush1.msra.mxu0 0.0
    %224 = vmatprep.subr.mxu0 0.0
    %225 = vmatpush1.msra.mxu0 0.0
    %226 = vmatprep.subr.mxu0 0.0
    %227 = vmatpush1.msra.mxu0 0.0
    %228 = vmatprep.subr.mxu0 0.0
    %229 = vmatpush1.msra.mxu0 0.0
    %230 = vmatprep.subr.mxu0 0.0
    %231 = vmatpush1.msra.mxu0 0.0
    %232 = vmatprep.subr.mxu0 0.0
    %233 = vmatpush1.msra.mxu0 0.0
    %234 = vmatprep.subr.mxu0 0.0
    %235 = vmatpush1.msra.mxu0 0.0
    %236 = vmatprep.subr.mxu0 0.0
    %237 = vmatpush1.msra.mxu0 0.0
    %238 = vmatprep.subr.mxu0 0.0
    %239 = vmatpush1.msra.mxu0 0.0
    %240 = vmatprep.subr.mxu0 0.0
    %241 = vmatpush1.msra.mxu0 0.0
    %242 = vmatprep.subr.mxu0 0.0
    %243 = vmatpush1.msra.mxu0 0.0
    %244 = vmatprep.subr.mxu0 0.0
    %245 = vmatpush1.msra.mxu0 0.0
    %246 = vmatprep.subr.mxu0 0.0
    %247 = vmatpush1.msra.mxu0 0.0
    %248 = vmatprep.subr.mxu0 0.0
    %249 = vmatpush1.msra.mxu0 0.0
    %250 = vmatprep.subr.mxu0 0.0
    %251 = vmatpush1.msra.mxu0 0.0
    %252 = vmatprep.subr.mxu0 0.0
    %253 = vmatpush1.msra.mxu0 0.0
    %254 = vmatprep.subr.mxu0 0.0
    %255 = vmatpush1.msra.mxu0 0.0
    %256 = vmatprep.subr.mxu0 0.0
    %257 = vmatpush1.msra.mxu0 0.0
    %258 = vmatprep.subr.mxu0 0.0
    %259 = vmatpush1.msra.mxu0 0.0
    %260 = vmatprep.subr.mxu0 0.0
    %261 = vmatpush1.msra.mxu0 0.0
    %262 = vmatprep.subr.mxu0 0.0
    %263 = vmatpush1.msra.mxu0 0.0
    %264 = vmatprep.subr.mxu0 0.0
    %265 = vmatpush1.msra.mxu0 0.0
    %266 = vmatprep.subr.mxu0 0.0
    %267 = vmatpush1.msra.mxu0 0.0
    %268 = vmatprep.subr.mxu0 0.0
    %269 = vmatpush1.msra.mxu0 0.0
    %270 = vmatprep.subr.mxu0 0.0
    %271 = vmatpush1.msra.mxu0 0.0
    %272 = vmatprep.subr.mxu0 0.0
    %273 = vmatpush1.msra.mxu0 0.0
    %274 = vmatprep.subr.mxu0 0.0
    %275 = vmatpush1.msra.mxu0 0.0
    %276 = vmatprep.subr.mxu0 0.0
    %277 = vmatpush1.msra.mxu0 0.0
    %278 = vmatprep.subr.mxu0 0.0
    %279 = vmatpush1.msra.mxu0 0.0
    %280 = vmatprep.subr.mxu0 0.0
    %281 = vmatpush1.msra.mxu0 0.0
    %282 = vmatprep.mubr.f32.mxu0 0.0
    %283 = vmatmul.mubr.f32.gmra.mrb[0].mxu0 %v216
    %v284 = vpop.f32.mrb[0].mxu0
    %v285 = vadd.f32 %v212, %v284
    %v286 = vpop.f32.mrb[0].mxu0
    %287 = vdwg.mxu0
    %v288 = vmax.f32 %v285, 0.0
    %v289 = vmul.f32 %v288, %v208
    %290 = vmatprep.subr.mxu0 0.0
    %291 = vmatpush1.msra.mxu0 %v193
    %292 = vmatprep.subr.mxu0 0.0
    %293 = vmatpush1.msra.mxu0 0.0
    %294 = vmatprep.subr.mxu0 0.0
    %295 = vmatpush1.msra.mxu0 0.0
    %296 = vmatprep.subr.mxu0 0.0
    %297 = vmatpush1.msra.mxu0 0.0
    %298 = vmatprep.subr.mxu0 0.0
    %299 = vmatpush1.msra.mxu0 0.0
    %300 = vmatprep.subr.mxu0 0.0
    %301 = vmatpush1.msra.mxu0 0.0
    %302 = vmatprep.subr.mxu0 0.0
    %303 = vmatpush1.msra.mxu0 0.0
    %304 = vmatprep.subr.mxu0 0.0
    %305 = vmatpush1.msra.mxu0 0.0
    %306 = vmatprep.subr.mxu0 0.0
    %307 = vmatpush1.msra.mxu0 0.0
    %308 = vmatprep.subr.mxu0 0.0
    %309 = vmatpush1.msra.mxu0 0.0
    %310 = vmatprep.subr.mxu0 0.0
    %311 = vmatpush1.msra.mxu0 0.0
    %312 = vmatprep.subr.mxu0 0.0
    %313 = vmatpush1.msra.mxu0 0.0
    %314 = vmatprep.subr.mxu0 0.0
    %315 = vmatpush1.msra.mxu0 0.0
    %316 = vmatprep.subr.mxu0 0.0
    %317 = vmatpush1.msra.mxu0 0.0
    %318 = vmatprep.subr.mxu0 0.0
    %319 = vmatpush1.msra.mxu0 0.0
    %320 = vmatprep.subr.mxu0 0.0
    %321 = vmatpush1.msra.mxu0 0.0
    %322 = vmatprep.subr.mxu0 0.0
    %323 = vmatpush1.msra.mxu0 0.0
    %324 = vmatprep.subr.mxu0 0.0
    %325 = vmatpush1.msra.mxu0 0.0
    %326 = vmatprep.subr.mxu0 0.0
    %327 = vmatpush1.msra.mxu0 0.0
    %328 = vmatprep.subr.mxu0 0.0
    %329 = vmatpush1.msra.mxu0 0.0
    %330 = vmatprep.subr.mxu0 0.0
    %331 = vmatpush1.msra.mxu0 0.0
    %332 = vmatprep.subr.mxu0 0.0
    %333 = vmatpush1.msra.mxu0 0.0
    %334 = vmatprep.subr.mxu0 0.0
    %335 = vmatpush1.msra.mxu0 0.0
    %336 = vmatprep.subr.mxu0 0.0
    %337 = vmatpush1.msra.mxu0 0.0
    %338 = vmatprep.subr.mxu0 0.0
    %339 = vmatpush1.msra.mxu0 0.0
    %340 = vmatprep.subr.mxu0 0.0
    %341 = vmatpush1.msra.mxu0 0.0
    %342 = vmatprep.subr.mxu0 0.0
    %343 = vmatpush1.msra.mxu0 0.0
    %344 = vmatprep.subr.mxu0 0.0
    %345 = vmatpush1.msra.mxu0 0.0
    %346 = vmatprep.subr.mxu0 0.0
    %347 = vmatpush1.msra.mxu0 0.0
    %348 = vmatprep.subr.mxu0 0.0
    %349 = vmatpush1.msra.mxu0 0.0
    %350 = vmatprep.subr.mxu0 0.0
    %351 = vmatpush1.msra.mxu0 0.0
    %352 = vmatprep.subr.mxu0 0.0
    %353 = vmatpush1.msra.mxu0 0.0
    %354 = vmatprep.mubr.f32.mxu0 0.0
    %355 = vmatmul.mubr.f32.gmra.mrb[0].mxu0 %v216
    %v356 = vpop.f32.mrb[0].mxu0
    %v357 = vadd.f32 %v212, %v356
    %v358 = vpop.f32.mrb[0].mxu0
    %359 = vdwg.mxu0
    %v360 = vmax.f32 %v357, 0.0
    %v361 = vmul.f32 %v360, %v208
    %362 = vmatprep.subr.mxu0 0.0
    %363 = vmatpush1.msra.mxu0 %v198
    %364 = vmatprep.subr.mxu0 0.0
    %365 = vmatpush1.msra.mxu0 0.0
    %366 = vmatprep.subr.mxu0 0.0
    %367 = vmatpush1.msra.mxu0 0.0
    %368 = vmatprep.subr.mxu0 0.0
    %369 = vmatpush1.msra.mxu0 0.0
    %370 = vmatprep.subr.mxu0 0.0
    %371 = vmatpush1.msra.mxu0 0.0
    %372 = vmatprep.subr.mxu0 0.0
    %373 = vmatpush1.msra.mxu0 0.0
    %374 = vmatprep.subr.mxu0 0.0
    %375 = vmatpush1.msra.mxu0 0.0
    %376 = vmatprep.subr.mxu0 0.0
    %377 = vmatpush1.msra.mxu0 0.0
    %378 = vmatprep.subr.mxu0 0.0
    %379 = vmatpush1.msra.mxu0 0.0
    %380 = vmatprep.subr.mxu0 0.0
    %381 = vmatpush1.msra.mxu0 0.0
    %382 = vmatprep.subr.mxu0 0.0
    %383 = vmatpush1.msra.mxu0 0.0
    %384 = vmatprep.subr.mxu0 0.0
    %385 = vmatpush1.msra.mxu0 0.0
    %386 = vmatprep.subr.mxu0 0.0
    %387 = vmatpush1.msra.mxu0 0.0
    %388 = vmatprep.subr.mxu0 0.0
    %389 = vmatpush1.msra.mxu0 0.0
    %390 = vmatprep.subr.mxu0 0.0
    %391 = vmatpush1.msra.mxu0 0.0
    %392 = vmatprep.subr.mxu0 0.0
    %393 = vmatpush1.msra.mxu0 0.0
    %394 = vmatprep.subr.mxu0 0.0
    %395 = vmatpush1.msra.mxu0 0.0
    %396 = vmatprep.subr.mxu0 0.0
    %397 = vmatpush1.msra.mxu0 0.0
    %398 = vmatprep.subr.mxu0 0.0
    %399 = vmatpush1.msra.mxu0 0.0
    %400 = vmatprep.subr.mxu0 0.0
    %401 = vmatpush1.msra.mxu0 0.0
    %402 = vmatprep.subr.mxu0 0.0
    %403 = vmatpush1.msra.mxu0 0.0
    %404 = vmatprep.subr.mxu0 0.0
    %405 = vmatpush1.msra.mxu0 0.0
    %406 = vmatprep.subr.mxu0 0.0
    %407 = vmatpush1.msra.mxu0 0.0
    %408 = vmatprep.subr.mxu0 0.0
    %409 = vmatpush1.msra.mxu0 0.0
    %410 = vmatprep.subr.mxu0 0.0
    %411 = vmatpush1.msra.mxu0 0.0
    %412 = vmatprep.subr.mxu0 0.0
    %413 = vmatpush1.msra.mxu0 0.0
    %414 = vmatprep.subr.mxu0 0.0
    %415 = vmatpush1.msra.mxu0 0.0
    %416 = vmatprep.subr.mxu0 0.0
    %417 = vmatpush1.msra.mxu0 0.0
    %418 = vmatprep.subr.mxu0 0.0
    %419 = vmatpush1.msra.mxu0 0.0
    %420 = vmatprep.subr.mxu0 0.0
    %421 = vmatpush1.msra.mxu0 0.0
    %422 = vmatprep.subr.mxu0 0.0
    %423 = vmatpush1.msra.mxu0 0.0
    %424 = vmatprep.subr.mxu0 0.0
    %425 = vmatpush1.msra.mxu0 0.0
    %426 = vmatprep.mubr.f32.mxu0 0.0
    %427 = vmatmul.mubr.f32.gmra.mrb[0].mxu0 %v216
    %v428 = vpop.f32.mrb[0].mxu0
    %v429 = vadd.f32 %v212, %v428
    %v430 = vpop.f32.mrb[0].mxu0
    %431 = vdwg.mxu0
    %v432 = vmax.f32 %v429, 0.0
    %v433 = vmul.f32 %v432, %v208
    %434 = vmatprep.subr.mxu0 0.0
    %435 = vmatpush1.msra.mxu0 %v203
    %436 = vmatprep.subr.mxu0 0.0
    %437 = vmatpush1.msra.mxu0 0.0
    %438 = vmatprep.subr.mxu0 0.0
    %439 = vmatpush1.msra.mxu0 0.0
    %440 = vmatprep.subr.mxu0 0.0
    %441 = vmatpush1.msra.mxu0 0.0
    %442 = vmatprep.subr.mxu0 0.0
    %443 = vmatpush1.msra.mxu0 0.0
    %444 = vmatprep.subr.mxu0 0.0
    %445 = vmatpush1.msra.mxu0 0.0
    %446 = vmatprep.subr.mxu0 0.0
    %447 = vmatpush1.msra.mxu0 0.0
    %448 = vmatprep.subr.mxu0 0.0
    %449 = vmatpush1.msra.mxu0 0.0
    %450 = vmatprep.subr.mxu0 0.0
    %451 = vmatpush1.msra.mxu0 0.0
    %452 = vmatprep.subr.mxu0 0.0
    %453 = vmatpush1.msra.mxu0 0.0
    %454 = vmatprep.subr.mxu0 0.0
    %455 = vmatpush1.msra.mxu0 0.0
    %456 = vmatprep.subr.mxu0 0.0
    %457 = vmatpush1.msra.mxu0 0.0
    %458 = vmatprep.subr.mxu0 0.0
    %459 = vmatpush1.msra.mxu0 0.0
    %460 = vmatprep.subr.mxu0 0.0
    %461 = vmatpush1.msra.mxu0 0.0
    %462 = vmatprep.subr.mxu0 0.0
    %463 = vmatpush1.msra.mxu0 0.0
    %464 = vmatprep.subr.mxu0 0.0
    %465 = vmatpush1.msra.mxu0 0.0
    %466 = vmatprep.subr.mxu0 0.0
    %467 = vmatpush1.msra.mxu0 0.0
    %468 = vmatprep.subr.mxu0 0.0
    %469 = vmatpush1.msra.mxu0 0.0
    %470 = vmatprep.subr.mxu0 0.0
    %471 = vmatpush1.msra.mxu0 0.0
    %472 = vmatprep.subr.mxu0 0.0
    %473 = vmatpush1.msra.mxu0 0.0
    %474 = vmatprep.subr.mxu0 0.0
    %475 = vmatpush1.msra.mxu0 0.0
    %476 = vmatprep.subr.mxu0 0.0
    %477 = vmatpush1.msra.mxu0 0.0
    %478 = vmatprep.subr.mxu0 0.0
    %479 = vmatpush1.msra.mxu0 0.0
    %480 = vmatprep.subr.mxu0 0.0
    %481 = vmatpush1.msra.mxu0 0.0
    %482 = vmatprep.subr.mxu0 0.0
    %483 = vmatpush1.msra.mxu0 0.0
    %484 = vmatprep.subr.mxu0 0.0
    %485 = vmatpush1.msra.mxu0 0.0
    %486 = vmatprep.subr.mxu0 0.0
    %487 = vmatpush1.msra.mxu0 0.0
    %488 = vmatprep.subr.mxu0 0.0
    %489 = vmatpush1.msra.mxu0 0.0
    %490 = vmatprep.subr.mxu0 0.0
    %491 = vmatpush1.msra.mxu0 0.0
    %492 = vmatprep.subr.mxu0 0.0
    %493 = vmatpush1.msra.mxu0 0.0
    %494 = vmatprep.subr.mxu0 0.0
    %495 = vmatpush1.msra.mxu0 0.0
    %496 = vmatprep.subr.mxu0 0.0
    %497 = vmatpush1.msra.mxu0 0.0
    %498 = vmatprep.mubr.f32.mxu0 0.0
    %499 = vmatmul.mubr.f32.gmra.mrb[0].mxu0 %v216
    %v500 = vpop.f32.mrb[0].mxu0
    %v501 = vadd.f32 %v212, %v500
    %v502 = vpop.f32.mrb[0].mxu0
    %503 = vdwg.mxu0
    %v504 = vmax.f32 %v501, 0.0
    %v505 = vmul.f32 %v504, %v208
    %v506 = vld [vmem:[#allocation7] sm:$0xff]
    %v507 = vld [vmem:[#allocation7 + $0x8] sm:$0xff]
    %v508 = vld [vmem:[#allocation7 + $0x10] sm:$0xff]
    %v509 = vld [vmem:[#allocation7 + $0x18] sm:$0xff]
    %v510 = vld [vmem:[#allocation7 + $0x20] sm:$0xff]
    %v511 = vld [vmem:[#allocation7 + $0x28] sm:$0xff]
    %v512 = vld [vmem:[#allocation7 + $0x30] sm:$0xff]
    %v513 = vld [vmem:[#allocation7 + $0x38] sm:$0xff]
    %v514 = vld [vmem:[#allocation7 + $0x40] sm:$0xff]
    %v515 = vld [vmem:[#allocation7 + $0x48] sm:$0xff]
    %v516 = vld [vmem:[#allocation7 + $0x50] sm:$0xff]
    %v517 = vld [vmem:[#allocation7 + $0x58] sm:$0xff]
    %v518 = vld [vmem:[#allocation7 + $0x60] sm:$0xff]
    %v519 = vld [vmem:[#allocation7 + $0x68] sm:$0xff]
    %v520 = vld [vmem:[#allocation7 + $0x70] sm:$0xff]
    %v521 = vld [vmem:[#allocation7 + $0x78] sm:$0xff]
    %v522 = vld [vmem:[#allocation7 + $0x80] sm:$0xff]
    %v523 = vld [vmem:[#allocation7 + $0x88] sm:$0xff]
    %v524 = vld [vmem:[#allocation7 + $0x90] sm:$0xff]
    %v525 = vld [vmem:[#allocation7 + $0x98] sm:$0xff]
    %v526 = vld [vmem:[#allocation7 + $0xa0] sm:$0xff]
    %v527 = vld [vmem:[#allocation7 + $0xa8] sm:$0xff]
    %v528 = vld [vmem:[#allocation7 + $0xb0] sm:$0xff]
    %v529 = vld [vmem:[#allocation7 + $0xb8] sm:$0xff]
    %v530 = vld [vmem:[#allocation7 + $0xc0] sm:$0xff]
    %v531 = vld [vmem:[#allocation7 + $0xc8] sm:$0xff]
    %v532 = vld [vmem:[#allocation7 + $0xd0] sm:$0xff]
    %v533 = vld [vmem:[#allocation7 + $0xd8] sm:$0xff]
    %v534 = vld [vmem:[#allocation7 + $0xe0] sm:$0xff]
    %v535 = vld [vmem:[#allocation7 + $0xe8] sm:$0xff]
    %v536 = vld [vmem:[#allocation7 + $0xf0] sm:$0xff]
    %v537 = vld [vmem:[#allocation7 + $0xf8] sm:$0xff]
    %538 = vmatprep.subr.mxu0 %v507
    %539 = vmatpush1.msra.mxu0 %v506
    %540 = vmatprep.subr.mxu0 %v509
    %541 = vmatpush1.msra.mxu0 %v508
    %542 = vmatprep.subr.mxu0 %v511
    %543 = vmatpush1.msra.mxu0 %v510
    %544 = vmatprep.subr.mxu0 %v513
    %545 = vmatpush1.msra.mxu0 %v512
    %546 = vmatprep.subr.mxu0 %v515
    %547 = vmatpush1.msra.mxu0 %v514
    %548 = vmatprep.subr.mxu0 %v517
    %549 = vmatpush1.msra.mxu0 %v516
    %550 = vmatprep.subr.mxu0 %v519
    %551 = vmatpush1.msra.mxu0 %v518
    %552 = vmatprep.subr.mxu0 %v521
    %553 = vmatpush1.msra.mxu0 %v520
    %554 = vmatprep.subr.mxu0 %v523
    %555 = vmatpush1.msra.mxu0 %v522
    %556 = vmatprep.subr.mxu0 %v525
    %557 = vmatpush1.msra.mxu0 %v524
    %558 = vmatprep.subr.mxu0 %v527
    %559 = vmatpush1.msra.mxu0 %v526
    %560 = vmatprep.subr.mxu0 %v529
    %561 = vmatpush1.msra.mxu0 %v528
    %562 = vmatprep.subr.mxu0 %v531
    %563 = vmatpush1.msra.mxu0 %v530
    %564 = vmatprep.subr.mxu0 %v533
    %565 = vmatpush1.msra.mxu0 %v532
    %566 = vmatprep.subr.mxu0 %v535
    %567 = vmatpush1.msra.mxu0 %v534
    %568 = vmatprep.subr.mxu0 %v537
    %569 = vmatpush1.msra.mxu0 %v536
    %570 = vmatprep.subr.mxu0 0.0
    %571 = vmatpush1.msra.mxu0 0.0
    %572 = vmatprep.subr.mxu0 0.0
    %573 = vmatpush1.msra.mxu0 0.0
    %574 = vmatprep.subr.mxu0 0.0
    %575 = vmatpush1.msra.mxu0 0.0
    %576 = vmatprep.subr.mxu0 0.0
    %577 = vmatpush1.msra.mxu0 0.0
    %578 = vmatprep.subr.mxu0 0.0
    %579 = vmatpush1.msra.mxu0 0.0
    %580 = vmatprep.subr.mxu0 0.0
    %581 = vmatpush1.msra.mxu0 0.0
    %582 = vmatprep.subr.mxu0 0.0
    %583 = vmatpush1.msra.mxu0 0.0
    %584 = vmatprep.subr.mxu0 0.0
    %585 = vmatpush1.msra.mxu0 0.0
    %586 = vmatprep.subr.mxu0 0.0
    %587 = vmatpush1.msra.mxu0 0.0
    %588 = vmatprep.subr.mxu0 0.0
    %589 = vmatpush1.msra.mxu0 0.0
    %590 = vmatprep.subr.mxu0 0.0
    %591 = vmatpush1.msra.mxu0 0.0
    %592 = vmatprep.subr.mxu0 0.0
    %593 = vmatpush1.msra.mxu0 0.0
    %594 = vmatprep.subr.mxu0 0.0
    %595 = vmatpush1.msra.mxu0 0.0
    %596 = vmatprep.subr.mxu0 0.0
    %597 = vmatpush1.msra.mxu0 0.0
    %598 = vmatprep.subr.mxu0 0.0
    %599 = vmatpush1.msra.mxu0 0.0
    %600 = vmatprep.subr.mxu0 0.0
    %601 = vmatpush1.msra.mxu0 0.0
    %602 = vmatprep.mubr.f32.mxu0 0.0
    %603 = vmatmul.mubr.f32.gmra.mrb[0].mxu0 %v289
    %v604 = vpop.f32.mrb[0].mxu0
    %v605 = vadd.f32 0.0, %v604
    %v606 = vpop.f32.mrb[0].mxu0
    %v607 = vadd.f32 0.0, %v606
    %608 = vmatprep.mubr.f32.mxu0 0.0
    %609 = vmatmul.mubr.f32.gmra.mrb[0].mxu0 %v361
    %v610 = vpop.f32.mrb[0].mxu0
    %v611 = vadd.f32 0.0, %v610
    %v612 = vpop.f32.mrb[0].mxu0
    %v613 = vadd.f32 0.0, %v612
    %614 = vmatprep.mubr.f32.mxu0 0.0
    %615 = vmatmul.mubr.f32.gmra.mrb[0].mxu0 %v433
    %v616 = vpop.f32.mrb[0].mxu0
    %v617 = vadd.f32 0.0, %v616
    %v618 = vpop.f32.mrb[0].mxu0
    %v619 = vadd.f32 0.0, %v618
    %620 = vmatprep.mubr.f32.mxu0 0.0
    %621 = vmatmul.mubr.f32.gmra.mrb[0].mxu0 %v505
    %v622 = vpop.f32.mrb[0].mxu0
    %v623 = vadd.f32 0.0, %v622
    %v624 = vpop.f32.mrb[0].mxu0
    %v625 = vadd.f32 0.0, %v624
    %626 = vdwg.mxu0
    %627 = vst [vmem:[#allocation8 + $0x10] sm:$0xff] %v605
    %628 = vst [vmem:[#allocation8 + $0x18] sm:$0xff] %v607
    %629 = vst [vmem:[#allocation8 + $0x30] sm:$0xff] %v611
    %630 = vst [vmem:[#allocation8 + $0x38] sm:$0xff] %v613
    %631 = vst [vmem:[#allocation8 + $0x50] sm:$0xff] %v617
    %632 = vst [vmem:[#allocation8 + $0x58] sm:$0xff] %v619
    %633 = vst [vmem:[#allocation8 + $0x70] sm:$0xff] %v623
    %634 = vst [vmem:[#allocation8 + $0x78] sm:$0xff] %v625
    // Predicated region
    $region38: #{tpu_custom_call.1} parent=1 // pred_check
      _
    $region39: #{tpu_custom_call.1} parent=1 // pred_check_branch
      %636 = sbr.rel (0) target = $region41
    $region40: #{tpu_custom_call.1} parent=1 // pred_region
      %s638 = ssub.s32 2048, 2048
      %639 = vsyncadd [#allocation4], %s638
      %s640 = sshll.u32 [#allocation8], 4
      %s641 = int_to_ptr.vmem [resolvable:$true] %s640
      %646 = dma.vmem_to_hbm [thread:$0]  %s641, 2048, %s6, [#allocation4], 256, 256, 16
    $region41: #{tpu_custom_call.1} parent=1 // pred_fallthru
      _
    // Predicated region
    $region42: #{tpu_custom_call.1} parent=1 // pred_check
      _
    $region43: #{tpu_custom_call.1} parent=1 // pred_check_branch
      %648 = sbr.rel (0) target = $region45
    $region44: #{tpu_custom_call.1} parent=1 // pred_region
      %649 = dma.done [#allocation4], 2048
    $region45: #{tpu_custom_call.1} parent=1 // pred_fallthru
      _
    %650 = vsyncpa [#allocation3], 1
    %651 = vsyncpa [#allocation6], 1
    %652 = vsyncpa [#allocation4], 1

</llo_original>
